<compile_context>
chip_gen: v6e
topology: v6e:2x2x1
jax: 0.10.0
libtpu: 0.0.40
codegen_flags: <defaults>
</compile_context>

<pallas_src>
import math
import functools

import jax
import jax.numpy as jnp
from jax.experimental import pallas as pl
from jax.experimental.pallas import tpu as pltpu


# ---------------------------------------------------------------------------
# Kernels (pure elementwise, x folded to (T, B*D): sublanes = time, lanes = B*D)
# ---------------------------------------------------------------------------
def _pe_add_kernel(x_ref, pe_ref, o_ref, *, d_model, bchunk):
    # x_ref/o_ref: (tT, bchunk*d_model); pe_ref: (tT, d_model); all in x.dtype.
    pe_row = pe_ref[...]
    for b in range(bchunk):                         # static unroll; strips are zero-cost ref views
        sl = slice(b * d_model, (b + 1) * d_model)
        o_ref[:, sl] = x_ref[:, sl] + pe_row


def _pe_add_dropout_kernel(x_ref, pe_ref, scale_ref, o_ref, *, d_model, bchunk):
    # scale_ref holds 0 (dropped) or 1/(1-p) (kept), precomputed in the wrapper.
    pe_row = pe_ref[...]
    for b in range(bchunk):
        sl = slice(b * d_model, (b + 1) * d_model)
        o_ref[:, sl] = (x_ref[:, sl] + pe_row) * scale_ref[:, sl]


# ---------------------------------------------------------------------------
# Parameter construction (mirrors nn.Module.__init__)
# ---------------------------------------------------------------------------
def make_pe_table(d_model: int, max_len: int = 1000) -> jnp.ndarray:
    """Return pe of shape (max_len, d_model): even cols = sin, odd cols = cos."""
    position = jnp.arange(max_len, dtype=jnp.float32)[:, None]            # (L, 1)
    div_term = jnp.exp(
        jnp.arange(0, d_model, 2, dtype=jnp.float32)
        * (-math.log(10000.0) / d_model)
    )                                                                      # (D/2,)
    angles = position * div_term                                           # (L, D/2)
    pe = jnp.stack([jnp.sin(angles), jnp.cos(angles)], axis=-1)            # interleave
    return pe.reshape(max_len, d_model).astype(jnp.float32)


# ---------------------------------------------------------------------------
# Tiling / VMEM budgeting (generation-aware)
# ---------------------------------------------------------------------------
def _vmem_capacity_bytes() -> int:
    try:
        return int(pltpu.get_tpu_info().vmem_capacity_bytes)
    except Exception:
        return 64 << 20            # conservative fallback (v7x physical VMEM per TC)


def _round8_up(n: int) -> int:
    return max(8, ((n + 7) // 8) * 8)


def _round8_down(n: int) -> int:
    return max(8, (n // 8) * 8)


def _choose_tiling(T: int, B: int, D: int, itemsize: int, n_big_streams: int):
    """Pick (tT, bchunk, vmem_limit) for the elementwise PE kernel."""
    cap = _vmem_capacity_bytes()
    # Leave headroom: ~38 MiB budget on v7x (64 MiB), ~77 MiB on v5e/v6e (128 MiB).
    budget = min(int(cap * 0.6), 96 << 20)

    def footprint(tT, bchunk):
        x_tile = tT * bchunk * D * itemsize          # x / out / (scale) blocks
        pe_tile = tT * D * itemsize
        return 2 * n_big_streams * x_tile + 2 * pe_tile   # everything double-buffered

    # Lane-axis fallback: only shrink the batch chunk if even an 8-row tile of
    # the full (B*D) fold would blow the budget; requires D % 128 == 0 so lane
    # blocks stay 128-aligned (true for any model large enough to need this).
    bchunk = B
    if footprint(8, B) > budget and D % 128 == 0 and B > 1:
        while bchunk > 1 and footprint(8, bchunk) > budget:
            bchunk = max(1, bchunk // 2)

    # Time tile: target ~4 MiB of x per block (HBM roofline plateau), shrink to
    # fit the budget, and keep >= ~4 time blocks when T allows (pipelining +
    # megacore sharding on v7x).
    row_bytes = max(1, bchunk * D * itemsize)
    tT = _round8_down((4 << 20) // row_bytes)
    while tT > 8 and footprint(tT, bchunk) > budget:
        tT = _round8_down(tT // 2)
    tT = min(tT, _round8_up(-(-T // 4)))             # never collapse to a 1-step grid
    tT = min(tT, _round8_up(T))                      # don't overshoot T

    fp = footprint(tT, bchunk)
    vmem_limit = int(min(max(2 * fp, 32 << 20), max(32 << 20, cap - (16 << 20))))
    return tT, bchunk, vmem_limit


# ---------------------------------------------------------------------------
# Pallas launcher
# ---------------------------------------------------------------------------
def _pallas_pe(x2: jnp.ndarray, pe_slice: jnp.ndarray, scale2) -> jnp.ndarray:
    T, BD = x2.shape
    _, D = pe_slice.shape
    B = BD // D
    dtype = x2.dtype
    itemsize = jnp.dtype(dtype).itemsize
    training = scale2 is not None

    n_big = 3 if training else 2                     # x, out, (+scale)
    tT, bchunk, vmem_limit = _choose_tiling(T, B, D, itemsize, n_big)
    tL = bchunk * D
    grid = (pl.cdiv(T, tT), pl.cdiv(B, bchunk))

    x_spec = pl.BlockSpec((tT, tL), lambda t, c: (t, c))
    pe_spec = pl.BlockSpec((tT, D), lambda t, c: (t, 0))
    out_spec = pl.BlockSpec((tT, tL), lambda t, c: (t, c))
    out_shape = jax.ShapeDtypeStruct((T, BD), dtype)

    cost = pl.CostEstimate(
        flops=(2 if training else 1) * T * BD,
        transcendentals=0,
        bytes_accessed=(n_big * T * BD + T * D) * itemsize,
    )
    cparams = pltpu.CompilerParams(
        dimension_semantics=("parallel", "parallel"),   # fully elementwise
        vmem_limit_bytes=vmem_limit,
    )

    if training:
        kernel = functools.partial(_pe_add_dropout_kernel, d_model=D, bchunk=bchunk)
        return pl.pallas_call(
            kernel,
            out_shape=out_shape,
            grid_spec=pltpu.PrefetchScalarGridSpec(
                num_scalar_prefetch=0,
                grid=grid,
                in_specs=[x_spec, pe_spec, x_spec],      # scale uses the x layout
                out_specs=out_spec,
            ),
            compiler_params=cparams,
            cost_estimate=cost,
        )(x2, pe_slice, scale2)

    kernel = functools.partial(_pe_add_kernel, d_model=D, bchunk=bchunk)
    return pl.pallas_call(
        kernel,
        out_shape=out_shape,
        grid_spec=pltpu.PrefetchScalarGridSpec(
            num_scalar_prefetch=0,
            grid=grid,
            in_specs=[x_spec, pe_spec],
            out_specs=out_spec,
        ),
        compiler_params=cparams,
        cost_estimate=cost,
    )(x2, pe_slice)


# ---------------------------------------------------------------------------
# Public wrapper (forward pass of the module)
# ---------------------------------------------------------------------------
def positional_encoding(
    x: jnp.ndarray,            # (T, B, D)
    pe: jnp.ndarray,           # (max_len, D)
    *,
    dropout_p: float = 0.1,
    training: bool = False,
    rng=None,
    force_pallas: bool = False,
) -> jnp.ndarray:
    T, B, D = x.shape
    dtype = x.dtype

    # Cast pe once in the wrapper; the add runs in x.dtype (documented minor
    # deviation from torch promotion for sub-f32 inputs; exact for f32).
    pe_slice = pe[:T].astype(dtype)                   # (T, D)

    apply_dropout = training and float(dropout_p) > 0.0

    if not apply_dropout and not force_pallas:
        # Eval: plain XLA add so it can fuse with neighbours (perf review item).
        return x + pe_slice[:, None, :]

    # Free fold: (T, B, D) -> (T, B*D). Lanes = B*D (d fastest), sublanes = time.
    x2 = x.reshape(T, B * D)

    if apply_dropout:
        if rng is None:
            rng = jax.random.PRNGKey(0)
        p = float(dropout_p)
        keep = jax.random.bernoulli(rng, 1.0 - p, (T, B * D))
        scale2 = jnp.where(keep, 1.0 / (1.0 - p), 0.0).astype(dtype)
        out2 = _pallas_pe(x2, pe_slice, scale2)
    else:
        out2 = _pallas_pe(x2, pe_slice, None)

    return out2.reshape(T, B, D)


# ---------------------------------------------------------------------------
# Main
# ---------------------------------------------------------------------------
if __name__ == "__main__":
    T, B, D = 8, 2, 32        # (time, batch, d_model)
    MAX_LEN = 1000

    key = jax.random.PRNGKey(0)
    kx, kdrop = jax.random.split(key)
    x = jax.random.normal(kx, (T, B, D), dtype=jnp.float32)
    pe = make_pe_table(D, MAX_LEN)

    ref = x + pe[:T][:, None, :]

    # Pallas add kernel (eval semantics), forced through Pallas to exercise it.
    out_eval = positional_encoding(x, pe, dropout_p=0.1, training=False, force_pallas=True)
    out_eval = jax.block_until_ready(out_eval)
    assert out_eval.shape == (T, B, D)
    assert jnp.allclose(out_eval, ref, atol=1e-6), "eval-mode (Pallas) mismatch"

    # Default eval path (XLA-fused add, per perf review) matches too.
    out_fused = jax.block_until_ready(positional_encoding(x, pe, training=False))
    assert jnp.allclose(out_fused, ref, atol=1e-6), "eval-mode (fused) mismatch"

    # Training mode: Pallas add + inverted dropout via precomputed keep mask.
    out_train = positional_encoding(x, pe, dropout_p=0.1, training=True, rng=kdrop)
    out_train = jax.block_until_ready(out_train)
    assert out_train.shape == (T, B, D)
    kept = out_train != 0.0
    assert jnp.allclose(
        jnp.where(kept, out_train, 0.0),
        jnp.where(kept, ref / (1.0 - 0.1), 0.0),
        atol=1e-5,
    ), "training-mode dropout scaling mismatch"

    print("KERNEL_OK")
</pallas_src>

<mosaic_0001>
module attributes {stable_mosaic.version = 11 : i64} {
  func.func @_pe_add_kernel(%arg0: i32, %arg1: i32, %arg2: memref<8x64xf32, #tpu.memory_space<vmem>>, %arg3: memref<8x32xf32, #tpu.memory_space<vmem>>, %arg4: memref<8x64xf32, #tpu.memory_space<vmem>>) attributes {dimension_semantics = [#tpu.dimension_semantics<parallel>, #tpu.dimension_semantics<parallel>], iteration_bounds = array<i64: 1, 1>, scalar_prefetch = 0 : i64, scratch_operands = 0 : i64, tpu.core_type = #tpu.core_type<tc>, window_params = [{transform_indices = @transform_0, window_bounds = array<i64: 8, 64>}, {transform_indices = @transform_1, window_bounds = array<i64: 8, 32>}, {transform_indices = @transform_2, window_bounds = array<i64: 8, 64>}]} {
    %c0 = arith.constant 0 : index
    %c0_0 = arith.constant 0 : index
    %0 = vector.load %arg3[%c0, %c0_0] : memref<8x32xf32, #tpu.memory_space<vmem>>, vector<8x32xf32>
    %c0_1 = arith.constant 0 : index
    %c0_2 = arith.constant 0 : index
    %1 = vector.load %arg2[%c0_1, %c0_2] : memref<8x64xf32, #tpu.memory_space<vmem>>, vector<8x32xf32>
    %2 = arith.addf %1, %0 : vector<8x32xf32>
    %c0_3 = arith.constant 0 : index
    %c0_4 = arith.constant 0 : index
    %3 = vector.load %arg4[%c0_3, %c0_4] : memref<8x64xf32, #tpu.memory_space<vmem>>, vector<8x32xf32>
    tpu.vector_store %arg4[%c0_3, %c0_4], %2 {strides = array<i32>} : memref<8x64xf32, #tpu.memory_space<vmem>>, vector<8x32xf32>,
    %c0_5 = arith.constant 0 : index
    %c32 = arith.constant 32 : index
    %4 = vector.load %arg2[%c0_5, %c32] : memref<8x64xf32, #tpu.memory_space<vmem>>, vector<8x32xf32>
    %5 = arith.addf %4, %0 : vector<8x32xf32>
    %c0_6 = arith.constant 0 : index
    %c32_7 = arith.constant 32 : index
    %6 = vector.load %arg4[%c0_6, %c32_7] : memref<8x64xf32, #tpu.memory_space<vmem>>, vector<8x32xf32>
    tpu.vector_store %arg4[%c0_6, %c32_7], %5 {strides = array<i32>} : memref<8x64xf32, #tpu.memory_space<vmem>>, vector<8x32xf32>,
    return
  }
  func.func @transform_0(%arg0: i32, %arg1: i32) -> (i32, i32) {
    %c0_i32 = arith.constant 0 : i32
    return %arg0, %arg1 : i32, i32
  }
  func.func @transform_1(%arg0: i32, %arg1: i32) -> (i32, i32) {
    %c0_i32 = arith.constant 0 : i32
    %c0_i32_0 = arith.constant 0 : i32
    return %arg0, %c0_i32 : i32, i32
  }
  func.func @transform_2(%arg0: i32, %arg1: i32) -> (i32, i32) {
    %c0_i32 = arith.constant 0 : i32
    return %arg0, %arg1 : i32, i32
  }
}

</mosaic_0001>

<llo_original>
// kernel: tpu_custom_call.1
$region0: #{tpu_custom_call.1}
  #allocation0 [shape = 'u32[]', space=smem, size = 0x4, offset = 0x4, fixed_abs, tag = 'smem constant byte address 0x4 - core index']
  #allocation1 [shape = 'u32[144,128]{1,0:T(1,128)}', space=vmem, size = 0x12000, scoped, tag = 'internal scratch']
  %s0 = inlined_call_operand.hbm [shape: f32[8,64], index: 0, kind: input, shape index: {}]
  %s1 = inlined_call_operand.hbm [shape: f32[8,32], index: 1, kind: input, shape index: {}]
  %s2 = inlined_call_operand.hbm [shape: f32[8,64], index: 2, kind: output, shape index: {}]
  %s3 = sld [smem:[#allocation0]]
  $region26: #{tpu_custom_call.1} parent=0
    _
  %s5 = ssub.s32 1, %s3
  %s6 = scalar_select 0, %s5, %s3
  $region1: #{tpu_custom_call.1} parent=0
    #allocation2 [shape = 'u8[4096]{0}', space=vmem, size = 0x1000, scoped, tag = 'input window, operand 0, single buffered']
    #allocation3 [shape = 's32[1]{0}', space=sflag, size = 0x4, scoped, tag = 'scoped memory for tpu_custom_call.1']
    #allocation4 [shape = 's32[1]{0}', space=sflag, size = 0x4, scoped, tag = 'scoped memory for tpu_custom_call.1']
    #allocation5 [shape = 'u8[4096]{0}', space=vmem, size = 0x1000, scoped, tag = 'input window, operand 1, single buffered']
    #allocation6 [shape = 's32[1]{0}', space=sflag, size = 0x4, scoped, tag = 'scoped memory for tpu_custom_call.1']
    #allocation7 [shape = 'u8[4096]{0}', space=vmem, size = 0x1000, scoped, tag = 'output window, operand 0, single buffered']
    %7 = vsyncpa [#allocation3], 0
    %8 = vsyncpa [#allocation6], 0
    %9 = vsyncpa [#allocation4], 0
    // Predicated region
    $region2: #{tpu_custom_call.1} parent=1 // pred_check
      _
    $region3: #{tpu_custom_call.1} parent=1 // pred_check_branch
      %11 = sbr.rel (0) target = $region5
    $region4: #{tpu_custom_call.1} parent=1 // pred_region
      %s13 = ssub.s32 128, 128
      %14 = vsyncadd [#allocation3], %s13
      %s16 = sshll.u32 [#allocation2], 4
      %s17 = int_to_ptr.vmem [resolvable:$true] %s16
      %19 = dma.hbm_to_vmem [thread:$0]  %s0, 128, %s17, [#allocation3]
    $region5: #{tpu_custom_call.1} parent=1 // pred_fallthru
      _
    // Predicated region
    $region6: #{tpu_custom_call.1} parent=1 // pred_check
      _
    $region7: #{tpu_custom_call.1} parent=1 // pred_check_branch
      %21 = sbr.rel (0) target = $region9
    $region8: #{tpu_custom_call.1} parent=1 // pred_region
      %s23 = ssub.s32 128, 128
      %24 = vsyncadd [#allocation6], %s23
      %s26 = sshll.u32 [#allocation5], 4
      %s27 = int_to_ptr.vmem [resolvable:$true] %s26
      %29 = dma.hbm_to_vmem [thread:$0]  %s1, 128, %s27, [#allocation6]
    $region9: #{tpu_custom_call.1} parent=1 // pred_fallthru
      _
    // Predicated region
    $region10: #{tpu_custom_call.1} parent=1 // pred_check
      _
    $region11: #{tpu_custom_call.1} parent=1 // pred_check_branch
      %31 = sbr.rel (0) target = $region13
    $region12: #{tpu_custom_call.1} parent=1 // pred_region
      %32 = dma.done [#allocation3], 128
    $region13: #{tpu_custom_call.1} parent=1 // pred_fallthru
      _
    // Predicated region
    $region14: #{tpu_custom_call.1} parent=1 // pred_check
      _
    $region15: #{tpu_custom_call.1} parent=1 // pred_check_branch
      %34 = sbr.rel (0) target = $region17
    $region16: #{tpu_custom_call.1} parent=1 // pred_region
      %35 = dma.done [#allocation6], 128
    $region17: #{tpu_custom_call.1} parent=1 // pred_fallthru
      _
    %v36 = vld [vmem:[#allocation5] sm:$0xff]
    %v37 = vld [vmem:[#allocation2] sm:$0xff]
    %v38 = vadd.f32 %v37, %v36
    %vm39 = vcmask 261120
    %40 = vst.msk [vmem:[#allocation7] sm:$0xff] %vm39, %v38
    %v41 = vld [vmem:[#allocation2] sm:$0xff]
    %43 = vrot.lane.b32.xlu0 %v36, 32
    %v44 = vpop.permute.xlu0 %43
    %v46 = vadd.f32 %v41, %v44
    %vm47 = vcmask 523520
    %48 = vst.msk [vmem:[#allocation7] sm:$0xff] %vm47, %v46
    // Predicated region
    $region18: #{tpu_custom_call.1} parent=1 // pred_check
      _
    $region19: #{tpu_custom_call.1} parent=1 // pred_check_branch
      %50 = sbr.rel (0) target = $region21
    $region20: #{tpu_custom_call.1} parent=1 // pred_region
      %s52 = ssub.s32 128, 128
      %53 = vsyncadd [#allocation4], %s52
      %s55 = sshll.u32 [#allocation7], 4
      %s56 = int_to_ptr.vmem [resolvable:$true] %s55
      %58 = dma.vmem_to_hbm [thread:$0]  %s56, 128, %s2, [#allocation4]
    $region21: #{tpu_custom_call.1} parent=1 // pred_fallthru
      _
    // Predicated region
    $region22: #{tpu_custom_call.1} parent=1 // pred_check
      _
    $region23: #{tpu_custom_call.1} parent=1 // pred_check_branch
      %60 = sbr.rel (0) target = $region25
    $region24: #{tpu_custom_call.1} parent=1 // pred_region
      %61 = dma.done [#allocation4], 128
    $region25: #{tpu_custom_call.1} parent=1 // pred_fallthru
      _
    %62 = vsyncpa [#allocation3], 1
    %63 = vsyncpa [#allocation6], 1
    %64 = vsyncpa [#allocation4], 1

</llo_original>
